<compile_context>
chip_gen: v6e
topology: v6e:2x2x1
jax: 0.10.0
libtpu: 0.0.40
codegen_flags: <defaults>
</compile_context>

<pallas_src>
import functools

import jax
import jax.numpy as jnp
from jax.experimental import pallas as pl
from jax.experimental.pallas import tpu as pltpu


_LANES = 128
_MAX_BLOCK_ROWS = 1024   # (1024, 128) f32 tile = 512 KiB per pipeline buffer
_NUM_SPLITS = 2          # leading "parallel" grid axis (both TCs on v7x)


def _round_up(a, b):
    return ((a + b - 1) // b) * b


def _vae_loss_kernel(x_ref, recon_ref, mu_ref, logvar_ref, disc_ref,
                     out_ref, acc_ref,
                     *, inv_n_recon, inv_n_disc, lamb, trd, adv, beta):
    c = pl.program_id(0)                 # split index ("parallel")
    i = pl.program_id(1)                 # reduction step ("arbitrary")

    # ---- init the running squared-error sum at the start of each split ----
    @pl.when(i == 0)
    def _():
        acc_ref[0, 0] = 0.0

    # ---- steady state: load tile, diff, square, reduce, accumulate ----
    diff = recon_ref[...].astype(jnp.float32) - x_ref[...].astype(jnp.float32)
    acc_ref[0, 0] += jnp.sum(diff * diff)

    # ---- finalize: once per split (tiny KLD / BCE terms stay out of the loop) ----
    @pl.when(i == pl.num_programs(1) - 1)
    def _():
        # This split's share of lamb * trd * MSE.
        contrib = (lamb * trd * inv_n_recon) * acc_ref[0, 0]

        # KL divergence: -0.5 * sum(1 + logvar - mu^2 - exp(logvar))
        mu = mu_ref[...].astype(jnp.float32)
        lv = logvar_ref[...].astype(jnp.float32)
        kld = -0.5 * jnp.sum(1.0 + lv - mu * mu - jnp.exp(lv))

        # BCEWithLogits vs target == 1  ==  mean(softplus(-d)), stable form.
        d = disc_ref[...].astype(jnp.float32)
        adv_sum = jnp.sum(jnp.maximum(-d, 0.0) + jnp.log1p(jnp.exp(-jnp.abs(d))))

        extra = lamb * (trd * beta * kld + adv * inv_n_disc * adv_sum)
        total = contrib + jnp.where(c == 0, extra, 0.0)   # add tiny terms once

        # Lane-dense unmasked store of this split's scalar contribution.
        out_ref[...] = jnp.full(out_ref.shape, total, dtype=jnp.float32)


def vae_loss(x, recon, mu, logvar, disc_output,
             lamb=1.0, trd=1.0, adv=10.0, beta=1.0):
    total = x.size

    # Derive a lane-dense, (8,128)-aligned tiling of the flattened recon slab.
    rows = pl.cdiv(total, _LANES)
    rows_per_split = pl.cdiv(rows, _NUM_SPLITS)
    block_rows = min(_MAX_BLOCK_ROWS, _round_up(rows_per_split, 8))
    rows_per_split = _round_up(rows_per_split, block_rows)
    n_inner = rows_per_split // block_rows
    padded_rows = _NUM_SPLITS * rows_per_split
    padded_total = padded_rows * _LANES

    def _slab(a):
        flat = a.reshape(-1)
        if padded_total != total:
            flat = jnp.pad(flat, (0, padded_total - total))  # zeros add 0 to SSE
        return flat.reshape(padded_rows, _LANES)

    x2 = _slab(x)          # keep original dtype; kernel upcasts in-register
    r2 = _slab(recon)
    mu2 = mu.reshape(mu.shape[0], -1)
    lv2 = logvar.reshape(logvar.shape[0], -1)
    d2 = disc_output.reshape(disc_output.shape[0], -1)

    kernel = functools.partial(
        _vae_loss_kernel,
        inv_n_recon=1.0 / float(total),
        inv_n_disc=1.0 / float(disc_output.size),
        lamb=float(lamb), trd=float(trd), adv=float(adv), beta=float(beta),
    )

    slab_spec = pl.BlockSpec((block_rows, _LANES),
                             lambda c, i: (c * n_inner + i, 0))
    itemsize = 4

    out = pl.pallas_call(
        kernel,
        out_shape=jax.ShapeDtypeStruct((_NUM_SPLITS * 8, _LANES), jnp.float32),
        grid_spec=pltpu.PrefetchScalarGridSpec(
            num_scalar_prefetch=0,
            grid=(_NUM_SPLITS, n_inner),
            in_specs=[
                slab_spec,                                        # x
                slab_spec,                                        # recon
                pl.BlockSpec(mu2.shape, lambda c, i: (0, 0)),     # mu (resident)
                pl.BlockSpec(lv2.shape, lambda c, i: (0, 0)),     # logvar (resident)
                pl.BlockSpec(d2.shape, lambda c, i: (0, 0)),      # disc (resident)
            ],
            out_specs=pl.BlockSpec((8, _LANES), lambda c, i: (c, 0)),
            scratch_shapes=[pltpu.SMEM((1, 1), jnp.float32)],     # running SSE
        ),
        compiler_params=pltpu.CompilerParams(
            dimension_semantics=("parallel", "arbitrary"),
        ),
        cost_estimate=pl.CostEstimate(
            flops=3 * total + 8 * mu.size + 6 * disc_output.size,
            transcendentals=mu.size + 2 * disc_output.size,
            bytes_accessed=(x2.size * x2.dtype.itemsize
                            + r2.size * r2.dtype.itemsize
                            + mu.size * itemsize
                            + logvar.size * itemsize
                            + disc_output.size * itemsize),
        ),
    )(x2, r2, mu2, lv2, d2)

    # Each split's (8,128) block is a broadcast of its scalar contribution.
    return jnp.sum(out.reshape(_NUM_SPLITS, 8, _LANES)[:, 0, 0])


def _reference(x, recon, mu, logvar, disc_output,
               lamb=1.0, trd=1.0, adv=10.0, beta=1.0):
    mse = jnp.mean((recon - x) ** 2)
    kld = -0.5 * jnp.sum(1.0 + logvar - mu ** 2 - jnp.exp(logvar))
    trd_loss = mse + beta * kld
    adv_loss = jnp.mean(jnp.maximum(-disc_output, 0.0)
                        + jnp.log1p(jnp.exp(-jnp.abs(disc_output))))
    return lamb * (trd * trd_loss + adv * adv_loss)


if __name__ == "__main__":
    key = jax.random.PRNGKey(0)
    k1, k2, k3, k4, k5 = jax.random.split(key, 5)

    B, C, H, W, Z = 2, 4, 16, 16, 32
    x = jax.random.normal(k1, (B, C, H, W), dtype=jnp.float32)
    recon = jax.random.normal(k2, (B, C, H, W), dtype=jnp.float32)
    mu = jax.random.normal(k3, (B, Z), dtype=jnp.float32) * 0.5
    logvar = jax.random.normal(k4, (B, Z), dtype=jnp.float32) * 0.1
    disc_output = jax.random.normal(k5, (B, 1), dtype=jnp.float32)

    loss = jax.block_until_ready(vae_loss(x, recon, mu, logvar, disc_output))
    ref = _reference(x, recon, mu, logvar, disc_output)

    assert jnp.allclose(loss, ref, rtol=1e-5, atol=1e-5), (loss, ref)
    print("KERNEL_OK")
</pallas_src>

<mosaic_0001>
module attributes {stable_mosaic.version = 11 : i64} {
  func.func @_vae_loss_kernel(%arg0: i32, %arg1: i32, %arg2: memref<8x128xf32, #tpu.memory_space<vmem>>, %arg3: memref<8x128xf32, #tpu.memory_space<vmem>>, %arg4: memref<2x32xf32, #tpu.memory_space<vmem>>, %arg5: memref<2x32xf32, #tpu.memory_space<vmem>>, %arg6: memref<2x1xf32, #tpu.memory_space<vmem>>, %arg7: memref<8x128xf32, #tpu.memory_space<vmem>>, %arg8: memref<1x1xf32, #tpu.memory_space<smem>>) attributes {dimension_semantics = [#tpu.dimension_semantics<parallel>, #tpu.dimension_semantics<arbitrary>], iteration_bounds = array<i64: 2, 1>, scalar_prefetch = 0 : i64, scratch_operands = 1 : i64, tpu.core_type = #tpu.core_type<tc>, window_params = [{transform_indices = @transform_0, window_bounds = array<i64: 8, 128>}, {transform_indices = @transform_1, window_bounds = array<i64: 8, 128>}, {pipeline_mode = #tpu.pipeline_mode<synchronous>, transform_indices = @transform_2, window_bounds = array<i64: 2, 32>}, {pipeline_mode = #tpu.pipeline_mode<synchronous>, transform_indices = @transform_3, window_bounds = array<i64: 2, 32>}, {pipeline_mode = #tpu.pipeline_mode<synchronous>, transform_indices = @transform_4, window_bounds = array<i64: 2, 1>}, {transform_indices = @transform_5, window_bounds = array<i64: 8, 128>}]} {
    %c0_i32 = arith.constant 0 : i32
    %0 = arith.cmpi eq, %arg1, %c0_i32 : i32
    %1 = arith.extui %0 : i1 to i32
    %c0_i32_0 = arith.constant 0 : i32
    %2 = arith.cmpi ne, %1, %c0_i32_0 : i32
    scf.if %2 {
      %cst_10 = arith.constant 0.000000e+00 : f32
      %c0_11 = arith.constant 0 : index
      %c0_12 = arith.constant 0 : index
      %17 = memref.load %arg8[%c0_11, %c0_12] : memref<1x1xf32, #tpu.memory_space<smem>>
      memref.store %cst_10, %arg8[%c0_11, %c0_12] : memref<1x1xf32, #tpu.memory_space<smem>>
    } else {
    }
    %c0 = arith.constant 0 : index
    %c0_1 = arith.constant 0 : index
    %3 = vector.load %arg3[%c0, %c0_1] : memref<8x128xf32, #tpu.memory_space<vmem>>, vector<8x128xf32>
    %c0_2 = arith.constant 0 : index
    %c0_3 = arith.constant 0 : index
    %4 = vector.load %arg2[%c0_2, %c0_3] : memref<8x128xf32, #tpu.memory_space<vmem>>, vector<8x128xf32>
    %5 = arith.subf %3, %4 : vector<8x128xf32>
    %c0_4 = arith.constant 0 : index
    %c0_5 = arith.constant 0 : index
    %6 = memref.load %arg8[%c0_4, %c0_5] : memref<1x1xf32, #tpu.memory_space<smem>>
    %7 = arith.mulf %5, %5 : vector<8x128xf32>
    %8 = vector.shape_cast %7 : vector<8x128xf32> to vector<1x8x128xf32>
    %cst = arith.constant dense<0.000000e+00> : vector<1xf32>
    %9 = vector.multi_reduction <add>, %8, %cst [1, 2] : vector<1x8x128xf32> to vector<1xf32>
    %10 = vector.shape_cast %9 : vector<1xf32> to vector<1x1x1xf32>
    %11 = vector.extract %10[0, 0, 0] : f32 from vector<1x1x1xf32>
    %12 = arith.addf %6, %11 : f32
    %c0_6 = arith.constant 0 : index
    %c0_7 = arith.constant 0 : index
    %13 = memref.load %arg8[%c0_6, %c0_7] : memref<1x1xf32, #tpu.memory_space<smem>>
    memref.store %12, %arg8[%c0_6, %c0_7] : memref<1x1xf32, #tpu.memory_space<smem>>
    %c0_i32_8 = arith.constant 0 : i32
    %14 = arith.cmpi eq, %arg1, %c0_i32_8 : i32
    %15 = arith.extui %14 : i1 to i32
    %c0_i32_9 = arith.constant 0 : i32
    %16 = arith.cmpi ne, %15, %c0_i32_9 : i32
    scf.if %16 {
      %c0_10 = arith.constant 0 : index
      %c0_11 = arith.constant 0 : index
      %17 = memref.load %arg8[%c0_10, %c0_11] : memref<1x1xf32, #tpu.memory_space<smem>>
      %cst_12 = arith.constant 4.8828125E-4 : f32
      %18 = arith.mulf %cst_12, %17 : f32
      %c0_13 = arith.constant 0 : index
      %c0_14 = arith.constant 0 : index
      %19 = vector.load %arg4[%c0_13, %c0_14] : memref<2x32xf32, #tpu.memory_space<vmem>>, vector<2x32xf32>
      %c0_15 = arith.constant 0 : index
      %c0_16 = arith.constant 0 : index
      %20 = vector.load %arg5[%c0_15, %c0_16] : memref<2x32xf32, #tpu.memory_space<vmem>>, vector<2x32xf32>
      %cst_17 = arith.constant 1.000000e+00 : f32
      %21 = vector.broadcast %cst_17 : f32 to vector<2x32xf32>
      %22 = arith.addf %21, %20 : vector<2x32xf32>
      %23 = arith.mulf %19, %19 : vector<2x32xf32>
      %24 = arith.subf %22, %23 : vector<2x32xf32>
      %25 = math.exp %20 : vector<2x32xf32>
      %26 = arith.subf %24, %25 : vector<2x32xf32>
      %27 = vector.shape_cast %26 : vector<2x32xf32> to vector<1x2x32xf32>
      %cst_18 = arith.constant dense<0.000000e+00> : vector<1xf32>
      %28 = vector.multi_reduction <add>, %27, %cst_18 [1, 2] : vector<1x2x32xf32> to vector<1xf32>
      %29 = vector.shape_cast %28 : vector<1xf32> to vector<1x1x1xf32>
      %30 = vector.extract %29[0, 0, 0] : f32 from vector<1x1x1xf32>
      %cst_19 = arith.constant -5.000000e-01 : f32
      %31 = arith.mulf %cst_19, %30 : f32
      %c0_20 = arith.constant 0 : index
      %c0_21 = arith.constant 0 : index
      %32 = vector.load %arg6[%c0_20, %c0_21] : memref<2x1xf32, #tpu.memory_space<vmem>>, vector<2x1xf32>
      %cst_22 = arith.constant 0.000000e+00 : f32
      %33 = vector.broadcast %cst_22 : f32 to vector<2x1xf32>
      %34 = arith.subf %33, %32 : vector<2x1xf32>
      %cst_23 = arith.constant 0.000000e+00 : f32
      %35 = vector.broadcast %cst_23 : f32 to vector<2x1xf32>
      %36 = arith.maximumf %34, %35 : vector<2x1xf32>
      %37 = math.absf %32 : vector<2x1xf32>
      %cst_24 = arith.constant 0.000000e+00 : f32
      %38 = vector.broadcast %cst_24 : f32 to vector<2x1xf32>
      %39 = arith.subf %38, %37 : vector<2x1xf32>
      %40 = math.exp %39 : vector<2x1xf32>
      %41 = math.log1p %40 : vector<2x1xf32>
      %42 = arith.addf %36, %41 : vector<2x1xf32>
      %43 = vector.shape_cast %42 : vector<2x1xf32> to vector<1x2x1xf32>
      %cst_25 = arith.constant dense<0.000000e+00> : vector<1xf32>
      %44 = vector.multi_reduction <add>, %43, %cst_25 [1, 2] : vector<1x2x1xf32> to vector<1xf32>
      %45 = vector.shape_cast %44 : vector<1xf32> to vector<1x1x1xf32>
      %46 = vector.extract %45[0, 0, 0] : f32 from vector<1x1x1xf32>
      %cst_26 = arith.constant 1.000000e+00 : f32
      %47 = arith.mulf %cst_26, %31 : f32
      %cst_27 = arith.constant 5.000000e+00 : f32
      %48 = arith.mulf %cst_27, %46 : f32
      %49 = arith.addf %47, %48 : f32
      %cst_28 = arith.constant 1.000000e+00 : f32
      %50 = arith.mulf %cst_28, %49 : f32
      %c0_i32_29 = arith.constant 0 : i32
      %51 = arith.cmpi eq, %arg0, %c0_i32_29 : i32
      %cst_30 = arith.constant 0.000000e+00 : f32
      %52 = arith.select %51, %50, %cst_30 : f32
      %53 = arith.addf %18, %52 : f32
      %54 = vector.broadcast %53 : f32 to vector<8x128xf32>
      %c0_31 = arith.constant 0 : index
      %c0_32 = arith.constant 0 : index
      %55 = vector.load %arg7[%c0_31, %c0_32] : memref<8x128xf32, #tpu.memory_space<vmem>>, vector<8x128xf32>
      tpu.vector_store %arg7[%c0_31, %c0_32], %54 {strides = array<i32>} : memref<8x128xf32, #tpu.memory_space<vmem>>, vector<8x128xf32>,
    } else {
    }
    return
  }
  func.func @transform_0(%arg0: i32, %arg1: i32) -> (i32, i32) {
    %c1_i32 = arith.constant 1 : i32
    %0 = arith.muli %arg0, %c1_i32 : i32
    %1 = arith.addi %0, %arg1 : i32
    %c0_i32 = arith.constant 0 : i32
    %c0_i32_0 = arith.constant 0 : i32
    return %1, %c0_i32 : i32, i32
  }
  func.func @transform_1(%arg0: i32, %arg1: i32) -> (i32, i32) {
    %c1_i32 = arith.constant 1 : i32
    %0 = arith.muli %arg0, %c1_i32 : i32
    %1 = arith.addi %0, %arg1 : i32
    %c0_i32 = arith.constant 0 : i32
    %c0_i32_0 = arith.constant 0 : i32
    return %1, %c0_i32 : i32, i32
  }
  func.func @transform_2(%arg0: i32, %arg1: i32) -> (i32, i32) {
    %c0_i32 = arith.constant 0 : i32
    %c0_i32_0 = arith.constant 0 : i32
    %c0_i32_1 = arith.constant 0 : i32
    return %c0_i32, %c0_i32_0 : i32, i32
  }
  func.func @transform_3(%arg0: i32, %arg1: i32) -> (i32, i32) {
    %c0_i32 = arith.constant 0 : i32
    %c0_i32_0 = arith.constant 0 : i32
    %c0_i32_1 = arith.constant 0 : i32
    return %c0_i32, %c0_i32_0 : i32, i32
  }
  func.func @transform_4(%arg0: i32, %arg1: i32) -> (i32, i32) {
    %c0_i32 = arith.constant 0 : i32
    %c0_i32_0 = arith.constant 0 : i32
    %c0_i32_1 = arith.constant 0 : i32
    return %c0_i32, %c0_i32_0 : i32, i32
  }
  func.func @transform_5(%arg0: i32, %arg1: i32) -> (i32, i32) {
    %c0_i32 = arith.constant 0 : i32
    %c0_i32_0 = arith.constant 0 : i32
    return %arg0, %c0_i32 : i32, i32
  }
}

</mosaic_0001>

<llo_original>
// kernel: tpu_custom_call.1
$region0: #{tpu_custom_call.1}
  #allocation0 [shape = 'u32[]', space=smem, size = 0x4, offset = 0x4, fixed_abs, tag = 'smem constant byte address 0x4 - core index']
  #allocation1 [shape = 'u32[144,128]{1,0:T(1,128)}', space=vmem, size = 0x12000, scoped, tag = 'internal scratch']
  #allocation2 [shape = 'f32[1,1]{1,0:T(1,128)}', space=smem, size = 0x200, scoped, tag = 'scratch operand']
  %s0 = inlined_call_operand.hbm [shape: f32[16,128], index: 0, kind: input, shape index: {}]
  %s1 = inlined_call_operand.hbm [shape: f32[16,128], index: 1, kind: input, shape index: {}]
  %s2 = inlined_call_operand.vmem [shape: f32[2,32], index: 2, kind: input, shape index: {}]
  %s3 = inlined_call_operand.vmem [shape: f32[2,32], index: 3, kind: input, shape index: {}]
  %s4 = inlined_call_operand.vmem [shape: f32[2,1], index: 4, kind: input, shape index: {}]
  %s5 = inlined_call_operand.hbm [shape: f32[16,128], index: 5, kind: output, shape index: {}]
  %s6 = sld [smem:[#allocation0]]
  $region69: #{tpu_custom_call.1} parent=0
    _
  %s8 = ssub.s32 1, %s6
  %s9 = scalar_select 0, %s8, %s6
  $region1: #{tpu_custom_call.1} parent=0
    #allocation3 [shape = 'u8[8192]{0}', space=vmem, size = 0x2000, scoped, tag = 'input window, operand 0']
    #allocation4 [shape = 's32[2]{0}', space=sflag, size = 0x8, scoped, tag = 'scoped memory for tpu_custom_call.1']
    #allocation5 [shape = 's32[2]{0}', space=sflag, size = 0x8, scoped, tag = 'scoped memory for tpu_custom_call.1']
    #allocation6 [shape = 'u8[8192]{0}', space=vmem, size = 0x2000, scoped, tag = 'input window, operand 1']
    #allocation7 [shape = 's32[2]{0}', space=sflag, size = 0x8, scoped, tag = 'scoped memory for tpu_custom_call.1']
    #allocation8 [shape = 'u8[8192]{0}', space=vmem, size = 0x2000, scoped, tag = 'output window, operand 0']
    %10 = vsyncpa [#allocation4], 0
    %s11 = scalar_lea.sflag [#allocation4], 1
    %12 = vsyncpa %s11, 0
    %13 = vsyncpa [#allocation7], 0
    %s14 = scalar_lea.sflag [#allocation7], 1
    %15 = vsyncpa %s14, 0
    %16 = vsyncpa [#allocation5], 0
    %s17 = scalar_lea.sflag [#allocation5], 1
    %18 = vsyncpa %s17, 0
    loop: start=0, step=1, limit=4
    $region2: #{tpu_custom_call.1} parent=1 // loop_pre_header
      _
    $region3: #{tpu_custom_call.1} parent=1 // loop_header
      %s20 = sphi 0, %s24
      %p21 = scmp.ge.s32.totalorder %s20, 4
      %s27 = sphi 0, %s39
      %s28 = sphi 0, %s35
      %s29 = sphi 0, %s27
      %s30 = sphi 0, %s28
      %s31 = sphi 0, %s29
      %s32 = sphi 0, %s30
      %s44 = sphi 0, %s46
      %s47 = sphi 0, %s44
      %s48 = sphi 0, %s47
      %s64 = sphi 0, %s48
      %s72 = sphi 0, %s74
      %s75 = sphi 0, %s72
      %s76 = sphi 0, %s75
      %s92 = sphi 0, %s76
      %s96 = sphi 0, %s96
      %s98 = sphi 0, %s96
      %s99 = sphi 0, %s98
      %s113 = sphi 0, %s99
      %s117 = sphi 0, %s117
      %s119 = sphi 0, %s117
      %s120 = sphi 0, %s119
      %s134 = sphi 0, %s120
      %s138 = sphi 0, %s138
      %s140 = sphi 0, %s138
      %s141 = sphi 0, %s140
      %s155 = sphi 0, %s141
      %s161 = sphi 0, %s163
      %s164 = sphi 0, %s161
      %s165 = sphi 0, %s164
      %s181 = sphi 0, %s165
    $region4: #{tpu_custom_call.1} parent=1 // loop_header_branch
      %23 = sbr.rel (%p21) target = $region8
    $region5: #{tpu_custom_call.1} parent=1 // loop_body
      %s25 = ssub.s32 %s20, 1
      %s26 = ssub.s32 %s20, 2
      %s33 = sadd.s32 1, %s28
      %p34 = scmp.ge.s32.totalorder %s33, 1
      %s35 = scalar_select %p34, 0, %s33
      %s36 = sadd.s32 1, %s27
      %s37 = scalar_select %p34, %s36, %s27
      %p38 = scmp.ge.s32.totalorder %s37, 2
      %s39 = scalar_select %p38, 0, %s37
      %s40 = sadd.s32 %s27, %s28
      %s41 = sadd.s32 %s39, %s35
      %s42 = ssub.s32 %s40, %s41
      %p43 = scmp.eq.s32.totalorder %s42, 0
      %s45 = sadd.s32 %s44, 1
      %s46 = scalar_select %p43, %s44, %s45
      %p49 = pneg %p43
      %p50 = scmp.eq.s32.totalorder %s20, 1
      %p51 = por %p49, %p50
      %p52 = scmp.ne.s32.totalorder %s44, %s47
      %p53 = scmp.eq.s32.totalorder %s20, 0
      %p54 = por %p52, %p53
      %p55 = scmp.ne.s32.totalorder %s44, %s47
      %p56 = scmp.eq.s32.totalorder %s25, 1
      %p57 = por %p55, %p56
      %p58 = scmp.ne.s32.totalorder %s47, %s48
      %p59 = scmp.eq.s32.totalorder %s25, 0
      %p60 = por %p58, %p59
      %p61 = scmp.ne.s32.totalorder %s47, %s48
      %p62 = scmp.eq.s32.totalorder %s26, 1
      %p63 = por %p61, %p62
      %p65 = scmp.ne.s32.totalorder %s48, %s64
      %p66 = scmp.eq.s32.totalorder %s26, 0
      %p67 = por %p65, %p66
      %s68 = sadd.s32 %s27, %s28
      %s69 = sadd.s32 %s39, %s35
      %s70 = ssub.s32 %s68, %s69
      %p71 = scmp.eq.s32.totalorder %s70, 0
      %s73 = sadd.s32 %s72, 1
      %s74 = scalar_select %p71, %s72, %s73
      %p77 = pneg %p71
      %p78 = scmp.eq.s32.totalorder %s20, 1
      %p79 = por %p77, %p78
      %p80 = scmp.ne.s32.totalorder %s72, %s75
      %p81 = scmp.eq.s32.totalorder %s20, 0
      %p82 = por %p80, %p81
      %p83 = scmp.ne.s32.totalorder %s72, %s75
      %p84 = scmp.eq.s32.totalorder %s25, 1
      %p85 = por %p83, %p84
      %p86 = scmp.ne.s32.totalorder %s75, %s76
      %p87 = scmp.eq.s32.totalorder %s25, 0
      %p88 = por %p86, %p87
      %p89 = scmp.ne.s32.totalorder %s75, %s76
      %p90 = scmp.eq.s32.totalorder %s26, 1
      %p91 = por %p89, %p90
      %p93 = scmp.ne.s32.totalorder %s76, %s92
      %p94 = scmp.eq.s32.totalorder %s26, 0
      %p95 = por %p93, %p94
      %s97 = sadd.s32 %s96, 1
      %p100 = scmp.eq.s32.totalorder %s20, 1
      %p101 = scmp.ne.s32.totalorder %s96, %s98
      %p102 = scmp.eq.s32.totalorder %s20, 0
      %p103 = por %p101, %p102
      %p104 = scmp.ne.s32.totalorder %s96, %s98
      %p105 = scmp.eq.s32.totalorder %s25, 1
      %p106 = por %p104, %p105
      %p107 = scmp.ne.s32.totalorder %s98, %s99
      %p108 = scmp.eq.s32.totalorder %s25, 0
      %p109 = por %p107, %p108
      %p110 = scmp.ne.s32.totalorder %s98, %s99
      %p111 = scmp.eq.s32.totalorder %s26, 1
      %p112 = por %p110, %p111
      %p114 = scmp.ne.s32.totalorder %s99, %s113
      %p115 = scmp.eq.s32.totalorder %s26, 0
      %p116 = por %p114, %p115
      %s118 = sadd.s32 %s117, 1
      %p121 = scmp.eq.s32.totalorder %s20, 1
      %p122 = scmp.ne.s32.totalorder %s117, %s119
      %p123 = scmp.eq.s32.totalorder %s20, 0
      %p124 = por %p122, %p123
      %p125 = scmp.ne.s32.totalorder %s117, %s119
      %p126 = scmp.eq.s32.totalorder %s25, 1
      %p127 = por %p125, %p126
      %p128 = scmp.ne.s32.totalorder %s119, %s120
      %p129 = scmp.eq.s32.totalorder %s25, 0
      %p130 = por %p128, %p129
      %p131 = scmp.ne.s32.totalorder %s119, %s120
      %p132 = scmp.eq.s32.totalorder %s26, 1
      %p133 = por %p131, %p132
      %p135 = scmp.ne.s32.totalorder %s120, %s134
      %p136 = scmp.eq.s32.totalorder %s26, 0
      %p137 = por %p135, %p136
      %s139 = sadd.s32 %s138, 1
      %p142 = scmp.eq.s32.totalorder %s20, 1
      %p143 = scmp.ne.s32.totalorder %s138, %s140
      %p144 = scmp.eq.s32.totalorder %s20, 0
      %p145 = por %p143, %p144
      %p146 = scmp.ne.s32.totalorder %s138, %s140
      %p147 = scmp.eq.s32.totalorder %s25, 1
      %p148 = por %p146, %p147
      %p149 = scmp.ne.s32.totalorder %s140, %s141
      %p150 = scmp.eq.s32.totalorder %s25, 0
      %p151 = por %p149, %p150
      %p152 = scmp.ne.s32.totalorder %s140, %s141
      %p153 = scmp.eq.s32.totalorder %s26, 1
      %p154 = por %p152, %p153
      %p156 = scmp.ne.s32.totalorder %s141, %s155
      %p157 = scmp.eq.s32.totalorder %s26, 0
      %p158 = por %p156, %p157
      %s159 = ssub.s32 %s27, %s39
      %p160 = scmp.eq.s32.totalorder %s159, 0
      %s162 = sadd.s32 %s161, 1
      %s163 = scalar_select %p160, %s161, %s162
      %p166 = pneg %p160
      %p167 = scmp.eq.s32.totalorder %s20, 1
      %p168 = por %p166, %p167
      %p169 = scmp.ne.s32.totalorder %s161, %s164
      %p170 = scmp.eq.s32.totalorder %s20, 0
      %p171 = por %p169, %p170
      %p172 = scmp.ne.s32.totalorder %s161, %s164
      %p173 = scmp.eq.s32.totalorder %s25, 1
      %p174 = por %p172, %p173
      %p175 = scmp.ne.s32.totalorder %s164, %s165
      %p176 = scmp.eq.s32.totalorder %s25, 0
      %p177 = por %p175, %p176
      %p178 = scmp.ne.s32.totalorder %s164, %s165
      %p179 = scmp.eq.s32.totalorder %s26, 1
      %p180 = por %p178, %p179
      %p182 = scmp.ne.s32.totalorder %s165, %s181
      %p183 = scmp.eq.s32.totalorder %s26, 0
      %p184 = por %p182, %p183
      %p185 = scmp.le.s32.totalorder 1, %s20
      %p186 = scmp.lt.s32.totalorder %s20, 3
      %p187 = pnand %p185, %p186
      %p188 = pneg %p187
      // Predicated region
      $region9: #{tpu_custom_call.1} parent=5 // pred_check
        _
      $region10: #{tpu_custom_call.1} parent=5 // pred_check_branch
        %190 = sbr.rel (%p187) target = $region12
      $region11: #{tpu_custom_call.1} parent=5 // pred_region
        %s191 = ssub.s32 %s20, 1
        // Predicated region
        $region13: #{tpu_custom_call.1} parent=11 // pred_check
          %p192 = pneg %p109
        $region14: #{tpu_custom_call.1} parent=11 // pred_check_branch
          %194 = sbr.rel (%p192) target = $region16
        $region15: #{tpu_custom_call.1} parent=11 // pred_region
          _
        $region16: #{tpu_custom_call.1} parent=11 // pred_fallthru
          _
        // Predicated region
        $region17: #{tpu_custom_call.1} parent=11 // pred_check
          %p195 = pneg %p130
        $region18: #{tpu_custom_call.1} parent=11 // pred_check_branch
          %197 = sbr.rel (%p195) target = $region20
        $region19: #{tpu_custom_call.1} parent=11 // pred_region
          _
        $region20: #{tpu_custom_call.1} parent=11 // pred_fallthru
          _
        // Predicated region
        $region21: #{tpu_custom_call.1} parent=11 // pred_check
          %p198 = pneg %p151
        $region22: #{tpu_custom_call.1} parent=11 // pred_check_branch
          %200 = sbr.rel (%p198) target = $region24
        $region23: #{tpu_custom_call.1} parent=11 // pred_region
          _
        $region24: #{tpu_custom_call.1} parent=11 // pred_fallthru
          _
      $region12: #{tpu_custom_call.1} parent=5 // pred_fallthru
        _
      %p201 = scmp.lt.s32.totalorder %s20, 2
      // Predicated region
      $region25: #{tpu_custom_call.1} parent=5 // pred_check
        %p202 = pneg %p201
      $region26: #{tpu_custom_call.1} parent=5 // pred_check_branch
        %204 = sbr.rel (%p202) target = $region28
      $region27: #{tpu_custom_call.1} parent=5 // pred_region
        // Predicated region
        $region29: #{tpu_custom_call.1} parent=27 // pred_check
          %p205 = pneg %p54
        $region30: #{tpu_custom_call.1} parent=27 // pred_check_branch
          %207 = sbr.rel (%p205) target = $region32
        $region31: #{tpu_custom_call.1} parent=27 // pred_region
          %s208 = sand.u32 %s44, 1
          %s209 = scalar_lea.sflag [#allocation4], %s208
          %s210 = sand.u32 %s44, 1
          %s211 = smul.addr %s210, 8
          %s212 = scalar_lea.vmem [#allocation3], %s211
          %s213 = sadd.s32 %s27, %s28
          %s215 = ssub.s32 128, 128
          %216 = vsyncadd %s209, %s215
          %s217 = smul.addr %s213, 128
          %s218 = scalar_lea.hbm %s0, %s217
          %s220 = sshll.u32 %s212, 4
          %s221 = int_to_ptr.vmem [resolvable:$true] %s220
          %223 = dma.hbm_to_vmem [thread:$0]  %s218, 128, %s221, %s209
        $region32: #{tpu_custom_call.1} parent=27 // pred_fallthru
          _
        // Predicated region
        $region33: #{tpu_custom_call.1} parent=27 // pred_check
          %p224 = pneg %p82
        $region34: #{tpu_custom_call.1} parent=27 // pred_check_branch
          %226 = sbr.rel (%p224) target = $region36
        $region35: #{tpu_custom_call.1} parent=27 // pred_region
          %s227 = sand.u32 %s72, 1
          %s228 = scalar_lea.sflag [#allocation7], %s227
          %s229 = sand.u32 %s72, 1
          %s230 = smul.addr %s229, 8
          %s231 = scalar_lea.vmem [#allocation6], %s230
          %s232 = sadd.s32 %s27, %s28
          %s234 = ssub.s32 128, 128
          %235 = vsyncadd %s228, %s234
          %s236 = smul.addr %s232, 128
          %s237 = scalar_lea.hbm %s1, %s236
          %s239 = sshll.u32 %s231, 4
          %s240 = int_to_ptr.vmem [resolvable:$true] %s239
          %242 = dma.hbm_to_vmem [thread:$0]  %s237, 128, %s240, %s228
        $region36: #{tpu_custom_call.1} parent=27 // pred_fallthru
          _
      $region28: #{tpu_custom_call.1} parent=5 // pred_fallthru
        _
      %p243 = scmp.le.s32.totalorder 1, %s20
      %p244 = scmp.lt.s32.totalorder %s20, 3
      %p245 = pnand %p243, %p244
      %p246 = pneg %p245
      // Predicated region
      $region37: #{tpu_custom_call.1} parent=5 // pred_check
        _
      $region38: #{tpu_custom_call.1} parent=5 // pred_check_branch
        %248 = sbr.rel (%p245) target = $region40
      $region39: #{tpu_custom_call.1} parent=5 // pred_region
        %s249 = ssub.s32 %s20, 1
        %s250 = sand.u32 %s47, 1
        %s251 = scalar_lea.sflag [#allocation4], %s250
        %s252 = sand.u32 %s47, 1
        %s253 = smul.addr %s252, 8
        %s254 = scalar_lea.vmem [#allocation3], %s253
        // Predicated region
        $region41: #{tpu_custom_call.1} parent=39 // pred_check
          %p255 = pneg %p60
        $region42: #{tpu_custom_call.1} parent=39 // pred_check_branch
          %257 = sbr.rel (%p255) target = $region44
        $region43: #{tpu_custom_call.1} parent=39 // pred_region
          %258 = dma.done %s251, 128
        $region44: #{tpu_custom_call.1} parent=39 // pred_fallthru
          _
        %s259 = sand.u32 %s75, 1
        %s260 = scalar_lea.sflag [#allocation7], %s259
        %s261 = sand.u32 %s75, 1
        %s262 = smul.addr %s261, 8
        %s263 = scalar_lea.vmem [#allocation6], %s262
        // Predicated region
        $region45: #{tpu_custom_call.1} parent=39 // pred_check
          %p264 = pneg %p88
        $region46: #{tpu_custom_call.1} parent=39 // pred_check_branch
          %266 = sbr.rel (%p264) target = $region48
        $region47: #{tpu_custom_call.1} parent=39 // pred_region
          %267 = dma.done %s260, 128
        $region48: #{tpu_custom_call.1} parent=39 // pred_fallthru
          _
        %s268 = sand.u32 %s47, 1
        %s269 = scalar_lea.sflag [#allocation4], %s268
        %s270 = sand.u32 %s47, 1
        %s271 = smul.addr %s270, 8
        %s272 = scalar_lea.vmem [#allocation3], %s271
        %p273 = pneg %p60
        %p274 = pneg %p57
        %s275 = sand.u32 %s75, 1
        %s276 = scalar_lea.sflag [#allocation7], %s275
        %s277 = sand.u32 %s75, 1
        %s278 = smul.addr %s277, 8
        %s279 = scalar_lea.vmem [#allocation6], %s278
        %p280 = pneg %p88
        %p281 = pneg %p85
        %p282 = pneg %p109
        %p283 = pneg %p106
        %p284 = pneg %p130
        %p285 = pneg %p127
        %p286 = pneg %p151
        %p287 = pneg %p148
        %p288 = pneg %p177
        %p289 = pneg %p174
        %s290 = sand.u32 %s164, 1
        %s291 = scalar_lea.sflag [#allocation5], %s290
        %s292 = sand.u32 %s164, 1
        %s293 = smul.addr %s292, 8
        %s294 = scalar_lea.vmem [#allocation8], %s293
        %s295 = sadd.s32 %s29, %s30
        %s296 = sadd.s32 %s29, %s30
        %p297 = scmp.eq.s32.totalorder %s30, 0
        // Predicated region
        $region49: #{tpu_custom_call.1} parent=39 // pred_check
          %p298 = pneg %p297
        $region50: #{tpu_custom_call.1} parent=39 // pred_check_branch
          %300 = sbr.rel (%p298) target = $region52
        $region51: #{tpu_custom_call.1} parent=39 // pred_region
          %s301 = scalar_lea.smem [#allocation2], 0
          %302 = sst [smem:[%s301]] 0.0
        $region52: #{tpu_custom_call.1} parent=39 // pred_fallthru
          _
        %v303 = vld [vmem:[%s263] sm:$0xff]
        %v304 = vld [vmem:[%s254] sm:$0xff]
        %v305 = vsub.f32 %v303, %v304
        %s306 = sld [smem:[#allocation2]]
        %v307 = vmul.f32 %v305, %v305
        %308 = vadd.xlane.f32.xlu0 %v307
        %v309 = vpop.xlane.xlu0 %308
        %v310 = vrot.slane %v309, 4
        %v311 = vadd.f32 %v309, %v310
        %v312 = vrot.slane %v311, 2
        %v313 = vadd.f32 %v311, %v312
        %v314 = vrot.slane %v313, 1
        %v315 = vadd.f32 %v313, %v314
        %s316 = vtos %v315
        %s317 = sadd.f32 %s306, %s316
        %s318 = scalar_lea.smem [#allocation2], 0
        %319 = sst [smem:[%s318]] %s317
        // Predicated region
        $region53: #{tpu_custom_call.1} parent=39 // pred_check
          %p320 = pneg %p297
        $region54: #{tpu_custom_call.1} parent=39 // pred_check_branch
          %322 = sbr.rel (%p320) target = $region56
        $region55: #{tpu_custom_call.1} parent=39 // pred_region
          %s323 = sld [smem:[#allocation2]]
          %s324 = smul.f32 %s323, 0.00048828125
          %v325 = vld [vmem:[%s2] sm:$0x3]
          %v326 = vld [vmem:[%s3] sm:$0x3]
          %v327 = vadd.f32 %v326, 1.0
          %v328 = vmul.f32 %v325, %v325
          %v329 = vsub.f32 %v327, %v328
          %v330 = vmul.f32 %v326, 1.442695
          %v331 = vpow.pop %v330
          %v332 = vsub.f32 %v329, %v331
          %vm333 = vcmask 254976
          %v334 = vsel %vm333, %v332, 0.0
          %335 = vadd.xlane.f32.xlu0 %v334
          %v336 = vpop.xlane.xlu0 %335
          %v337 = vrot.slane %v336, 4
          %v338 = vadd.f32 %v336, %v337
          %v339 = vrot.slane %v338, 2
          %v340 = vadd.f32 %v338, %v339
          %v341 = vrot.slane %v340, 1
          %v342 = vadd.f32 %v340, %v341
          %s343 = vtos %v342
          %s344 = smul.f32 %s343, -0.5
          %v345 = vld [vmem:[%s4] sm:$0x3]
          %v346 = vsub.f32 0.0, %v345
          %v347 = vmax.f32 %v346, 0.0
          %v348 = vand.u32 2147483647, %v345
          %v349 = vsub.f32 0.0, %v348
          %v350 = vmul.f32 %v349, 1.442695
          %v351 = vpow.pop %v350
          %v352 = vadd.f32 %v351, 1.0
          %v353 = vlog2.pop %v352
          %v354 = vmul.f32 %v353, 0.6931472
          %v355 = vmul.f32 -0.5, %v351
          %v356 = vadd.f32 %v355, 1.0
          %v357 = vmul.f32 %v356, %v351
          %v358 = vand.u32 2147483647, %v351
          %vm359 = vcmp.lt.f32.partialorder %v358, 0.0004427343
          %v360 = vsel %vm359, %v357, %v354
          %v361 = vadd.f32 %v347, %v360
          %vm362 = vcmask 1024
          %v363 = vsel %vm362, %v361, 0.0
          %364 = vadd.xlane.f32.xlu0 %v363
          %v365 = vpop.xlane.xlu0 %364
          %v366 = vrot.slane %v365, 4
          %v367 = vadd.f32 %v365, %v366
          %v368 = vrot.slane %v367, 2
          %v369 = vadd.f32 %v367, %v368
          %v370 = vrot.slane %v369, 1
          %v371 = vadd.f32 %v369, %v370
          %s372 = vtos %v371
          %s373 = smul.f32 %s372, 5.0
          %s374 = sadd.f32 %s344, %s373
          %p375 = scmp.eq.s32.totalorder %s29, 0
          %s376 = scalar_select %p375, %s374, 0.0
          %s377 = sadd.f32 %s324, %s376
          %v378 = vstv %s377
          %379 = vst [vmem:[%s294] sm:$0xff] %v378
        $region56: #{tpu_custom_call.1} parent=39 // pred_fallthru
          _
        %s380 = sand.u32 %s164, 1
        %s381 = scalar_lea.sflag [#allocation5], %s380
        %s382 = sand.u32 %s164, 1
        %s383 = smul.addr %s382, 8
        %s384 = scalar_lea.vmem [#allocation8], %s383
        // Predicated region
        $region57: #{tpu_custom_call.1} parent=39 // pred_check
          %p385 = pneg %p174
        $region58: #{tpu_custom_call.1} parent=39 // pred_check_branch
          %387 = sbr.rel (%p385) target = $region60
        $region59: #{tpu_custom_call.1} parent=39 // pred_region
          %s389 = ssub.s32 128, 128
          %390 = vsyncadd %s381, %s389
          %s391 = smul.addr %s29, 128
          %s392 = scalar_lea.hbm %s5, %s391
          %s394 = sshll.u32 %s384, 4
          %s395 = int_to_ptr.vmem [resolvable:$true] %s394
          %397 = dma.vmem_to_hbm [thread:$0]  %s395, 128, %s392, %s381
        $region60: #{tpu_custom_call.1} parent=39 // pred_fallthru
          _
      $region40: #{tpu_custom_call.1} parent=5 // pred_fallthru
        _
      %p398 = scmp.le.s32.totalorder 2, %s20
      // Predicated region
      $region61: #{tpu_custom_call.1} parent=5 // pred_check
        %p399 = pneg %p398
      $region62: #{tpu_custom_call.1} parent=5 // pred_check_branch
        %401 = sbr.rel (%p399) target = $region64
      $region63: #{tpu_custom_call.1} parent=5 // pred_region
        %s402 = ssub.s32 %s20, 2
        // Predicated region
        $region65: #{tpu_custom_call.1} parent=63 // pred_check
          %p403 = pneg %p180
        $region66: #{tpu_custom_call.1} parent=63 // pred_check_branch
          %405 = sbr.rel (%p403) target = $region68
        $region67: #{tpu_custom_call.1} parent=63 // pred_region
          %s406 = sand.u32 %s165, 1
          %s407 = scalar_lea.sflag [#allocation5], %s406
          %s408 = sand.u32 %s165, 1
          %s409 = smul.addr %s408, 8
          %s410 = scalar_lea.vmem [#allocation8], %s409
          %411 = dma.done %s407, 128
        $region68: #{tpu_custom_call.1} parent=63 // pred_fallthru
          _
      $region64: #{tpu_custom_call.1} parent=5 // pred_fallthru
        _
    $region6: #{tpu_custom_call.1} parent=1 // loop_footer
      %s24 = sadd.s32 1, %s20
    $region7: #{tpu_custom_call.1} parent=1 // loop_footer_branch
      %19 = sbr.rel target = $region3
    $region8: #{tpu_custom_call.1} parent=1 // loop_exit
      _
    %412 = vsyncpa [#allocation4], 1
    %s413 = scalar_lea.sflag [#allocation4], 1
    %414 = vsyncpa %s413, 1
    %415 = vsyncpa [#allocation7], 1
    %s416 = scalar_lea.sflag [#allocation7], 1
    %417 = vsyncpa %s416, 1
    %418 = vsyncpa [#allocation5], 1
    %s419 = scalar_lea.sflag [#allocation5], 1
    %420 = vsyncpa %s419, 1

</llo_original>
